<compile_context>
chip_gen: v6e
topology: v6e:2x2x1
jax: 0.10.0
libtpu: 0.0.40
codegen_flags: <defaults>
</compile_context>

<pallas_src>
import functools

import jax
import jax.numpy as jnp
import numpy as np
from jax.experimental import pallas as pl
from jax.experimental.pallas import tpu as pltpu

WEIGHT = 2.0 / 3.0      # weighted-Jacobi damping
SMOOTHING_NUM = 3       # as in the torch forward
COARSE_NUM = 10         # as in the torch forward
LANES = 128


def _vmem_spec():
    # whole-array resident in VMEM (shapes here are tiny, no tiling needed)
    return pl.BlockSpec(memory_space=pltpu.MemorySpace.VMEM)


def _round_up(n, m=LANES):
    return ((n + m - 1) // m) * m


def _pad2(mat, rows, cols):
    # zero-pad a 2-D array up to (rows, cols); zeros keep the padded lanes
    # inert through every dot (no inf/NaN contamination).
    return jnp.zeros((rows, cols), jnp.float32).at[:mat.shape[0], :mat.shape[1]].set(mat)


# ---------------------------------------------------------------------------
# Single fused kernel: `num` two-grid V-cycles on pre-folded operators.
#   per cycle (row-vector form, everything lane-dense / 128-padded):
#     x1 = x  @ S3_T + c3            # 3 pre-smoothing sweeps folded
#     rc = bP - x1 @ ATP             # residual + restriction folded
#     ec = rc @ K_T                  # 10 coarse Jacobi sweeps folded
#     x  = x1 @ S3_T + ec @ PTS3_T + c3   # correction + 3 post-smooth folded
#   -> 4 dependent MXU dots on the critical path per cycle.
# ---------------------------------------------------------------------------
def twogrid_kernel(s3_t_ref, atp_ref, k_t_ref, pts3_t_ref, c3_ref, bp_ref,
                   x_ref, out_ref, *, num):
    S3_T = s3_t_ref[...]        # (NFp, NFp)  (S^3)^T,  S = I - w D^-1 A
    ATP = atp_ref[...]          # (NFp, NCp)  A^T P
    K_T = k_t_ref[...]          # (NCp, NCp)  (sum_k Sc^k diag(wDc^-1))^T
    PTS3_T = pts3_t_ref[...]    # (NCp, NFp)  P^T (S^3)^T
    c3 = c3_ref[...]            # (1, NFp)    (I + S + S^2) w D^-1 b   (row)
    bP = bp_ref[...]            # (1, NCp)    b^T P

    def dot(a, b):
        return jnp.dot(a, b, preferred_element_type=jnp.float32)

    def vcycle(xv):
        x1 = dot(xv, S3_T) + c3                    # pre-smoothing (3 sweeps)
        rc = bP - dot(x1, ATP)                     # restricted residual
        ec = dot(rc, K_T)                          # coarse solve (10 sweeps)
        # x1 @ S3_T is independent of the rc/ec chain -> off the critical path
        return dot(x1, S3_T) + dot(ec, PTS3_T) + c3  # correction + post-smooth

    xv = x_ref[...]
    if num <= 8:
        # fully unrolled: bounded trip count, lets the scheduler pack work
        # across cycle boundaries on this latency-bound kernel.
        for _ in range(num):
            xv = vcycle(xv)
    else:
        xv = jax.lax.fori_loop(0, num, lambda _, v: vcycle(v), xv)
    out_ref[...] = xv


# ---------------------------------------------------------------------------
# Wrapper == TrainP.forward
# ---------------------------------------------------------------------------
def train_p_forward(A, p_row, p_col, p_val, nrow, ncol, num, b, x):
    A = A.astype(jnp.float32)

    # glue: densify CSR prolongation (nrow x ncol). Use .add so duplicate
    # (row, col) entries sum, matching strict CSR semantics.
    nnz = p_col.shape[0]
    row_ids = jnp.repeat(jnp.arange(nrow, dtype=jnp.int32),
                         jnp.diff(p_row), total_repeat_length=nnz)
    P = jnp.zeros((nrow, ncol), jnp.float32).at[row_ids, p_col].add(
        p_val.astype(jnp.float32))

    b_vec = b.reshape(nrow).astype(jnp.float32)
    x_row = x.reshape(1, nrow).astype(jnp.float32)

    # ----- tg.Setup equivalent + algebraic folding (loop-invariant, once) ---
    eye_f = jnp.eye(nrow, dtype=jnp.float32)
    wdf = WEIGHT / jnp.diagonal(A)                         # w / diag(A)
    S = eye_f - wdf[:, None] * A                           # Jacobi iteration matrix
    S2 = S @ S
    S3_T = (S2 @ S).T                                      # (S^3)^T
    c3 = ((eye_f + S + S2) @ (wdf * b_vec)).reshape(1, nrow)

    Ac = P.T @ A @ P                                       # Galerkin coarse operator
    eye_c = jnp.eye(ncol, dtype=jnp.float32)
    wdc = WEIGHT / jnp.diagonal(Ac)
    Sc = eye_c - wdc[:, None] * Ac
    poly = eye_c                                           # sum_{k=0}^{9} Sc^k
    acc = eye_c
    for _ in range(COARSE_NUM - 1):
        acc = acc @ Sc
        poly = poly + acc
    K_T = (poly * wdc[None, :]).T                          # (poly @ diag(wdc))^T

    ATP = A.T @ P                                          # residual+restrict fold
    bP = b_vec[None, :] @ P                                # (1, NC)
    PTS3_T = P.T @ S3_T                                    # correction+post-smooth fold

    # ----- lane-pad everything to multiples of 128 (zero padding) -----------
    NFp, NCp = _round_up(nrow), _round_up(ncol)
    S3_T_p = _pad2(S3_T, NFp, NFp)
    ATP_p = _pad2(ATP, NFp, NCp)
    K_T_p = _pad2(K_T, NCp, NCp)
    PTS3_T_p = _pad2(PTS3_T, NCp, NFp)
    c3_p = _pad2(c3, 1, NFp)
    bP_p = _pad2(bP, 1, NCp)
    x_p = _pad2(x_row, 1, NFp)

    kernel = functools.partial(twogrid_kernel, num=int(num))

    out_row = pl.pallas_call(
        kernel,
        out_shape=jax.ShapeDtypeStruct((1, NFp), jnp.float32),
        in_specs=[_vmem_spec()] * 7,
        out_specs=_vmem_spec(),
        input_output_aliases={6: 0},    # reuse the padded-x buffer for the output
    )(S3_T_p, ATP_p, K_T_p, PTS3_T_p, c3_p, bP_p, x_p)

    return out_row[0, :nrow].reshape(x.shape)   # back to the torch (n, 1) convention


if __name__ == "__main__":
    NF, NC = 32, 8      # fine / coarse problem sizes
    NUM = 3             # self.num: number of two-grid cycles

    # Deterministic fine operator: 1-D Laplacian (SPD, classic AMG test matrix).
    idx = np.arange(NF)
    A_np = np.zeros((NF, NF), np.float32)
    A_np[idx, idx] = 2.0
    A_np[idx[:-1], idx[:-1] + 1] = -1.0
    A_np[idx[1:], idx[1:] - 1] = -1.0
    A = jnp.asarray(A_np)

    # CSR prolongation: aggregation of 4 fine nodes per coarse node
    # (one nonzero per row; p_val is the trainable parameter).
    p_row = jnp.arange(NF + 1, dtype=jnp.int32)
    p_col = jnp.asarray(idx // 4, dtype=jnp.int32)

    key = jax.random.PRNGKey(0)
    k1, k2, k3 = jax.random.split(key, 3)
    p_val = 0.5 + 0.1 * jax.random.uniform(k1, (NF,), jnp.float32)
    b = jax.random.normal(k2, (NF, 1), jnp.float32)
    x0 = jax.random.normal(k3, (NF, 1), jnp.float32)

    x_out = train_p_forward(A, p_row, p_col, p_val, NF, NC, NUM, b, x0)
    jax.block_until_ready(x_out)
    assert x_out.shape == (NF, 1) and bool(jnp.all(jnp.isfinite(x_out)))
    print("KERNEL_OK")
</pallas_src>

<mosaic_0001>
module attributes {stable_mosaic.version = 11 : i64} {
  func.func @twogrid_kernel(%arg0: memref<128x128xf32, #tpu.memory_space<vmem>>, %arg1: memref<128x128xf32, #tpu.memory_space<vmem>>, %arg2: memref<128x128xf32, #tpu.memory_space<vmem>>, %arg3: memref<128x128xf32, #tpu.memory_space<vmem>>, %arg4: memref<1x128xf32, #tpu.memory_space<vmem>>, %arg5: memref<1x128xf32, #tpu.memory_space<vmem>>, %arg6: memref<1x128xf32, #tpu.memory_space<vmem>>, %arg7: memref<1x128xf32, #tpu.memory_space<vmem>>) attributes {dimension_semantics = [], scalar_prefetch = 0 : i64, scratch_operands = 0 : i64, tpu.core_type = #tpu.core_type<tc>} {
    %c0 = arith.constant 0 : index
    %c0_0 = arith.constant 0 : index
    %0 = vector.load %arg0[%c0, %c0_0] : memref<128x128xf32, #tpu.memory_space<vmem>>, vector<128x128xf32>
    %c0_1 = arith.constant 0 : index
    %c0_2 = arith.constant 0 : index
    %1 = vector.load %arg1[%c0_1, %c0_2] : memref<128x128xf32, #tpu.memory_space<vmem>>, vector<128x128xf32>
    %c0_3 = arith.constant 0 : index
    %c0_4 = arith.constant 0 : index
    %2 = vector.load %arg2[%c0_3, %c0_4] : memref<128x128xf32, #tpu.memory_space<vmem>>, vector<128x128xf32>
    %c0_5 = arith.constant 0 : index
    %c0_6 = arith.constant 0 : index
    %3 = vector.load %arg3[%c0_5, %c0_6] : memref<128x128xf32, #tpu.memory_space<vmem>>, vector<128x128xf32>
    %c0_7 = arith.constant 0 : index
    %c0_8 = arith.constant 0 : index
    %4 = vector.load %arg4[%c0_7, %c0_8] : memref<1x128xf32, #tpu.memory_space<vmem>>, vector<1x128xf32>
    %c0_9 = arith.constant 0 : index
    %c0_10 = arith.constant 0 : index
    %5 = vector.load %arg5[%c0_9, %c0_10] : memref<1x128xf32, #tpu.memory_space<vmem>>, vector<1x128xf32>
    %c0_11 = arith.constant 0 : index
    %c0_12 = arith.constant 0 : index
    %6 = vector.load %arg6[%c0_11, %c0_12] : memref<1x128xf32, #tpu.memory_space<vmem>>, vector<1x128xf32>
    %cst = arith.constant dense<0.000000e+00> : vector<1x128xf32>
    %7 = tpu.matmul %6, %0, %cst {dimension_numbers = #tpu.dot_dimension_numbers<[1], [0], [0], [1], [0, 0, 1, 1], [], []>} : vector<1x128xf32>, vector<128x128xf32>, vector<1x128xf32> -> vector<1x128xf32>
    %8 = arith.addf %7, %4 : vector<1x128xf32>
    %cst_13 = arith.constant dense<0.000000e+00> : vector<1x128xf32>
    %9 = tpu.matmul %8, %1, %cst_13 {dimension_numbers = #tpu.dot_dimension_numbers<[1], [0], [0], [1], [0, 0, 1, 1], [], []>} : vector<1x128xf32>, vector<128x128xf32>, vector<1x128xf32> -> vector<1x128xf32>
    %10 = arith.subf %5, %9 : vector<1x128xf32>
    %cst_14 = arith.constant dense<0.000000e+00> : vector<1x128xf32>
    %11 = tpu.matmul %10, %2, %cst_14 {dimension_numbers = #tpu.dot_dimension_numbers<[1], [0], [0], [1], [0, 0, 1, 1], [], []>} : vector<1x128xf32>, vector<128x128xf32>, vector<1x128xf32> -> vector<1x128xf32>
    %cst_15 = arith.constant dense<0.000000e+00> : vector<1x128xf32>
    %12 = tpu.matmul %8, %0, %cst_15 {dimension_numbers = #tpu.dot_dimension_numbers<[1], [0], [0], [1], [0, 0, 1, 1], [], []>} : vector<1x128xf32>, vector<128x128xf32>, vector<1x128xf32> -> vector<1x128xf32>
    %cst_16 = arith.constant dense<0.000000e+00> : vector<1x128xf32>
    %13 = tpu.matmul %11, %3, %cst_16 {dimension_numbers = #tpu.dot_dimension_numbers<[1], [0], [0], [1], [0, 0, 1, 1], [], []>} : vector<1x128xf32>, vector<128x128xf32>, vector<1x128xf32> -> vector<1x128xf32>
    %14 = arith.addf %12, %13 : vector<1x128xf32>
    %15 = arith.addf %14, %4 : vector<1x128xf32>
    %cst_17 = arith.constant dense<0.000000e+00> : vector<1x128xf32>
    %16 = tpu.matmul %15, %0, %cst_17 {dimension_numbers = #tpu.dot_dimension_numbers<[1], [0], [0], [1], [0, 0, 1, 1], [], []>} : vector<1x128xf32>, vector<128x128xf32>, vector<1x128xf32> -> vector<1x128xf32>
    %17 = arith.addf %16, %4 : vector<1x128xf32>
    %cst_18 = arith.constant dense<0.000000e+00> : vector<1x128xf32>
    %18 = tpu.matmul %17, %1, %cst_18 {dimension_numbers = #tpu.dot_dimension_numbers<[1], [0], [0], [1], [0, 0, 1, 1], [], []>} : vector<1x128xf32>, vector<128x128xf32>, vector<1x128xf32> -> vector<1x128xf32>
    %19 = arith.subf %5, %18 : vector<1x128xf32>
    %cst_19 = arith.constant dense<0.000000e+00> : vector<1x128xf32>
    %20 = tpu.matmul %19, %2, %cst_19 {dimension_numbers = #tpu.dot_dimension_numbers<[1], [0], [0], [1], [0, 0, 1, 1], [], []>} : vector<1x128xf32>, vector<128x128xf32>, vector<1x128xf32> -> vector<1x128xf32>
    %cst_20 = arith.constant dense<0.000000e+00> : vector<1x128xf32>
    %21 = tpu.matmul %17, %0, %cst_20 {dimension_numbers = #tpu.dot_dimension_numbers<[1], [0], [0], [1], [0, 0, 1, 1], [], []>} : vector<1x128xf32>, vector<128x128xf32>, vector<1x128xf32> -> vector<1x128xf32>
    %cst_21 = arith.constant dense<0.000000e+00> : vector<1x128xf32>
    %22 = tpu.matmul %20, %3, %cst_21 {dimension_numbers = #tpu.dot_dimension_numbers<[1], [0], [0], [1], [0, 0, 1, 1], [], []>} : vector<1x128xf32>, vector<128x128xf32>, vector<1x128xf32> -> vector<1x128xf32>
    %23 = arith.addf %21, %22 : vector<1x128xf32>
    %24 = arith.addf %23, %4 : vector<1x128xf32>
    %cst_22 = arith.constant dense<0.000000e+00> : vector<1x128xf32>
    %25 = tpu.matmul %24, %0, %cst_22 {dimension_numbers = #tpu.dot_dimension_numbers<[1], [0], [0], [1], [0, 0, 1, 1], [], []>} : vector<1x128xf32>, vector<128x128xf32>, vector<1x128xf32> -> vector<1x128xf32>
    %26 = arith.addf %25, %4 : vector<1x128xf32>
    %cst_23 = arith.constant dense<0.000000e+00> : vector<1x128xf32>
    %27 = tpu.matmul %26, %1, %cst_23 {dimension_numbers = #tpu.dot_dimension_numbers<[1], [0], [0], [1], [0, 0, 1, 1], [], []>} : vector<1x128xf32>, vector<128x128xf32>, vector<1x128xf32> -> vector<1x128xf32>
    %28 = arith.subf %5, %27 : vector<1x128xf32>
    %cst_24 = arith.constant dense<0.000000e+00> : vector<1x128xf32>
    %29 = tpu.matmul %28, %2, %cst_24 {dimension_numbers = #tpu.dot_dimension_numbers<[1], [0], [0], [1], [0, 0, 1, 1], [], []>} : vector<1x128xf32>, vector<128x128xf32>, vector<1x128xf32> -> vector<1x128xf32>
    %cst_25 = arith.constant dense<0.000000e+00> : vector<1x128xf32>
    %30 = tpu.matmul %26, %0, %cst_25 {dimension_numbers = #tpu.dot_dimension_numbers<[1], [0], [0], [1], [0, 0, 1, 1], [], []>} : vector<1x128xf32>, vector<128x128xf32>, vector<1x128xf32> -> vector<1x128xf32>
    %cst_26 = arith.constant dense<0.000000e+00> : vector<1x128xf32>
    %31 = tpu.matmul %29, %3, %cst_26 {dimension_numbers = #tpu.dot_dimension_numbers<[1], [0], [0], [1], [0, 0, 1, 1], [], []>} : vector<1x128xf32>, vector<128x128xf32>, vector<1x128xf32> -> vector<1x128xf32>
    %32 = arith.addf %30, %31 : vector<1x128xf32>
    %33 = arith.addf %32, %4 : vector<1x128xf32>
    %c0_27 = arith.constant 0 : index
    %c0_28 = arith.constant 0 : index
    %34 = vector.load %arg7[%c0_27, %c0_28] : memref<1x128xf32, #tpu.memory_space<vmem>>, vector<1x128xf32>
    tpu.vector_store %arg7[%c0_27, %c0_28], %33 {strides = array<i32>} : memref<1x128xf32, #tpu.memory_space<vmem>>, vector<1x128xf32>,
    return
  }
}

</mosaic_0001>

<llo_original>
// kernel: tpu_custom_call.1
$region0: #{tpu_custom_call.1}
  #allocation0 [shape = 'u32[]', space=smem, size = 0x4, offset = 0x4, fixed_abs, tag = 'smem constant byte address 0x4 - core index']
  #allocation1 [shape = 'u32[144,128]{1,0:T(1,128)}', space=vmem, size = 0x12000, scoped, tag = 'internal scratch']
  %s0 = inlined_call_operand.hbm [shape: f32[128,128], index: 0, kind: input, shape index: {}]
  %s1 = inlined_call_operand.hbm [shape: f32[128,128], index: 1, kind: input, shape index: {}]
  %s2 = inlined_call_operand.hbm [shape: f32[128,128], index: 2, kind: input, shape index: {}]
  %s3 = inlined_call_operand.hbm [shape: f32[128,128], index: 3, kind: input, shape index: {}]
  %s4 = inlined_call_operand.vmem [shape: f32[1,128], index: 4, kind: input, shape index: {}]
  %s5 = inlined_call_operand.vmem [shape: f32[1,128], index: 5, kind: input, shape index: {}]
  %s6 = inlined_call_operand.hbm [shape: f32[1,128], index: 6, kind: input, shape index: {}, may-alias: {6,7}]
  %s7 = inlined_call_operand.hbm [shape: f32[1,128], index: 7, kind: output, shape index: {}, may-alias: {6,7}]
  %s8 = sld [smem:[#allocation0]]
  $region58: #{tpu_custom_call.1} parent=0
    _
  %s10 = ssub.s32 1, %s8
  %s11 = scalar_select 0, %s10, %s8
  $region1: #{tpu_custom_call.1} parent=0
    #allocation2 [shape = 'u8[65536]{0}', space=vmem, size = 0x10000, scoped, tag = 'input window, operand 0, single buffered']
    #allocation3 [shape = 's32[1]{0}', space=sflag, size = 0x4, scoped, tag = 'scoped memory for tpu_custom_call.1']
    #allocation4 [shape = 's32[1]{0}', space=sflag, size = 0x4, scoped, tag = 'scoped memory for tpu_custom_call.1']
    #allocation5 [shape = 'u8[65536]{0}', space=vmem, size = 0x10000, scoped, tag = 'input window, operand 1, single buffered']
    #allocation6 [shape = 's32[1]{0}', space=sflag, size = 0x4, scoped, tag = 'scoped memory for tpu_custom_call.1']
    #allocation7 [shape = 'u8[65536]{0}', space=vmem, size = 0x10000, scoped, tag = 'input window, operand 2, single buffered']
    #allocation8 [shape = 'u8[65536]{0}', space=vmem, size = 0x10000, scoped, tag = 'input window, operand 3, single buffered']
    #allocation9 [shape = 's32[1]{0}', space=sflag, size = 0x4, scoped, tag = 'scoped memory for tpu_custom_call.1']
    #allocation10 [shape = 'u8[512]{0}', space=vmem, size = 0x400, scoped, tag = 'input window, operand 6, single buffered']
    #allocation11 [shape = 'u8[512]{0}', space=vmem, size = 0x400, scoped, tag = 'output window, operand 0, single buffered']
    %12 = vsyncpa [#allocation3], 0
    %13 = vsyncpa [#allocation6], 0
    %14 = vsyncpa [#allocation9], 0
    %15 = vsyncpa [#allocation4], 0
    // Predicated region
    $region2: #{tpu_custom_call.1} parent=1 // pred_check
      _
    $region3: #{tpu_custom_call.1} parent=1 // pred_check_branch
      %17 = sbr.rel (0) target = $region5
    $region4: #{tpu_custom_call.1} parent=1 // pred_region
      %s19 = ssub.s32 2048, 2048
      %20 = vsyncadd [#allocation3], %s19
      %s21 = sshll.u32 [#allocation2], 4
      %s22 = int_to_ptr.vmem [resolvable:$true] %s21
      %27 = dma.hbm_to_vmem [thread:$0]  %s0, 2048, %s22, [#allocation3], 128, 128, 8
    $region5: #{tpu_custom_call.1} parent=1 // pred_fallthru
      _
    // Predicated region
    $region6: #{tpu_custom_call.1} parent=1 // pred_check
      _
    $region7: #{tpu_custom_call.1} parent=1 // pred_check_branch
      %29 = sbr.rel (0) target = $region9
    $region8: #{tpu_custom_call.1} parent=1 // pred_region
      %s31 = ssub.s32 2048, 2048
      %32 = vsyncadd [#allocation6], %s31
      %s33 = sshll.u32 [#allocation5], 4
      %s34 = int_to_ptr.vmem [resolvable:$true] %s33
      %39 = dma.hbm_to_vmem [thread:$0]  %s1, 2048, %s34, [#allocation6], 128, 128, 8
    $region9: #{tpu_custom_call.1} parent=1 // pred_fallthru
      _
    // Predicated region
    $region10: #{tpu_custom_call.1} parent=1 // pred_check
      _
    $region11: #{tpu_custom_call.1} parent=1 // pred_check_branch
      %41 = sbr.rel (0) target = $region13
    $region12: #{tpu_custom_call.1} parent=1 // pred_region
      %s43 = ssub.s32 2048, 2048
      %44 = vsyncadd [#allocation6], %s43
      %s45 = sshll.u32 [#allocation7], 4
      %s46 = int_to_ptr.vmem [resolvable:$true] %s45
      %51 = dma.hbm_to_vmem [thread:$0]  %s2, 2048, %s46, [#allocation6], 128, 128, 8
    $region13: #{tpu_custom_call.1} parent=1 // pred_fallthru
      _
    // Predicated region
    $region14: #{tpu_custom_call.1} parent=1 // pred_check
      _
    $region15: #{tpu_custom_call.1} parent=1 // pred_check_branch
      %53 = sbr.rel (0) target = $region17
    $region16: #{tpu_custom_call.1} parent=1 // pred_region
      %s55 = ssub.s32 2048, 2048
      %56 = vsyncadd [#allocation9], %s55
      %s57 = sshll.u32 [#allocation8], 4
      %s58 = int_to_ptr.vmem [resolvable:$true] %s57
      %63 = dma.hbm_to_vmem [thread:$0]  %s3, 2048, %s58, [#allocation9], 128, 128, 8
    $region17: #{tpu_custom_call.1} parent=1 // pred_fallthru
      _
    // Predicated region
    $region18: #{tpu_custom_call.1} parent=1 // pred_check
      _
    $region19: #{tpu_custom_call.1} parent=1 // pred_check_branch
      %65 = sbr.rel (0) target = $region21
    $region20: #{tpu_custom_call.1} parent=1 // pred_region
      _
    $region21: #{tpu_custom_call.1} parent=1 // pred_fallthru
      _
    // Predicated region
    $region22: #{tpu_custom_call.1} parent=1 // pred_check
      _
    $region23: #{tpu_custom_call.1} parent=1 // pred_check_branch
      %67 = sbr.rel (0) target = $region25
    $region24: #{tpu_custom_call.1} parent=1 // pred_region
      _
    $region25: #{tpu_custom_call.1} parent=1 // pred_fallthru
      _
    // Predicated region
    $region26: #{tpu_custom_call.1} parent=1 // pred_check
      _
    $region27: #{tpu_custom_call.1} parent=1 // pred_check_branch
      %69 = sbr.rel (0) target = $region29
    $region28: #{tpu_custom_call.1} parent=1 // pred_region
      %s71 = ssub.s32 16, 16
      %72 = vsyncadd [#allocation9], %s71
      %s74 = sshll.u32 [#allocation10], 4
      %s75 = int_to_ptr.vmem [resolvable:$true] %s74
      %77 = dma.hbm_to_vmem [thread:$0]  %s6, 16, %s75, [#allocation9]
    $region29: #{tpu_custom_call.1} parent=1 // pred_fallthru
      _
    // Predicated region
    $region30: #{tpu_custom_call.1} parent=1 // pred_check
      _
    $region31: #{tpu_custom_call.1} parent=1 // pred_check_branch
      %79 = sbr.rel (0) target = $region33
    $region32: #{tpu_custom_call.1} parent=1 // pred_region
      %80 = dma.done [#allocation3], 2048
    $region33: #{tpu_custom_call.1} parent=1 // pred_fallthru
      _
    // Predicated region
    $region34: #{tpu_custom_call.1} parent=1 // pred_check
      _
    $region35: #{tpu_custom_call.1} parent=1 // pred_check_branch
      %82 = sbr.rel (0) target = $region37
    $region36: #{tpu_custom_call.1} parent=1 // pred_region
      %83 = dma.done [#allocation6], 2048
    $region37: #{tpu_custom_call.1} parent=1 // pred_fallthru
      _
    // Predicated region
    $region38: #{tpu_custom_call.1} parent=1 // pred_check
      _
    $region39: #{tpu_custom_call.1} parent=1 // pred_check_branch
      %85 = sbr.rel (0) target = $region41
    $region40: #{tpu_custom_call.1} parent=1 // pred_region
      %86 = dma.done [#allocation6], 2048
    $region41: #{tpu_custom_call.1} parent=1 // pred_fallthru
      _
    // Predicated region
    $region42: #{tpu_custom_call.1} parent=1 // pred_check
      _
    $region43: #{tpu_custom_call.1} parent=1 // pred_check_branch
      %88 = sbr.rel (0) target = $region45
    $region44: #{tpu_custom_call.1} parent=1 // pred_region
      %89 = dma.done [#allocation9], 2048
    $region45: #{tpu_custom_call.1} parent=1 // pred_fallthru
      _
    // Predicated region
    $region46: #{tpu_custom_call.1} parent=1 // pred_check
      _
    $region47: #{tpu_custom_call.1} parent=1 // pred_check_branch
      %91 = sbr.rel (0) target = $region49
    $region48: #{tpu_custom_call.1} parent=1 // pred_region
      %92 = dma.done [#allocation9], 16
    $region49: #{tpu_custom_call.1} parent=1 // pred_fallthru
      _
    %v93 = vld [vmem:[#allocation2] sm:$0xff]
    %v94 = vld [vmem:[#allocation2 + $0x8] sm:$0xff]
    %v95 = vld [vmem:[#allocation2 + $0x10] sm:$0xff]
    %v96 = vld [vmem:[#allocation2 + $0x18] sm:$0xff]
    %v97 = vld [vmem:[#allocation2 + $0x20] sm:$0xff]
    %v98 = vld [vmem:[#allocation2 + $0x28] sm:$0xff]
    %v99 = vld [vmem:[#allocation2 + $0x30] sm:$0xff]
    %v100 = vld [vmem:[#allocation2 + $0x38] sm:$0xff]
    %v101 = vld [vmem:[#allocation2 + $0x40] sm:$0xff]
    %v102 = vld [vmem:[#allocation2 + $0x48] sm:$0xff]
    %v103 = vld [vmem:[#allocation2 + $0x50] sm:$0xff]
    %v104 = vld [vmem:[#allocation2 + $0x58] sm:$0xff]
    %v105 = vld [vmem:[#allocation2 + $0x60] sm:$0xff]
    %v106 = vld [vmem:[#allocation2 + $0x68] sm:$0xff]
    %v107 = vld [vmem:[#allocation2 + $0x70] sm:$0xff]
    %v108 = vld [vmem:[#allocation2 + $0x78] sm:$0xff]
    %v109 = vld [vmem:[#allocation5] sm:$0xff]
    %v110 = vld [vmem:[#allocation5 + $0x8] sm:$0xff]
    %v111 = vld [vmem:[#allocation5 + $0x10] sm:$0xff]
    %v112 = vld [vmem:[#allocation5 + $0x18] sm:$0xff]
    %v113 = vld [vmem:[#allocation5 + $0x20] sm:$0xff]
    %v114 = vld [vmem:[#allocation5 + $0x28] sm:$0xff]
    %v115 = vld [vmem:[#allocation5 + $0x30] sm:$0xff]
    %v116 = vld [vmem:[#allocation5 + $0x38] sm:$0xff]
    %v117 = vld [vmem:[#allocation5 + $0x40] sm:$0xff]
    %v118 = vld [vmem:[#allocation5 + $0x48] sm:$0xff]
    %v119 = vld [vmem:[#allocation5 + $0x50] sm:$0xff]
    %v120 = vld [vmem:[#allocation5 + $0x58] sm:$0xff]
    %v121 = vld [vmem:[#allocation5 + $0x60] sm:$0xff]
    %v122 = vld [vmem:[#allocation5 + $0x68] sm:$0xff]
    %v123 = vld [vmem:[#allocation5 + $0x70] sm:$0xff]
    %v124 = vld [vmem:[#allocation5 + $0x78] sm:$0xff]
    %v125 = vld [vmem:[#allocation7] sm:$0xff]
    %v126 = vld [vmem:[#allocation7 + $0x8] sm:$0xff]
    %v127 = vld [vmem:[#allocation7 + $0x10] sm:$0xff]
    %v128 = vld [vmem:[#allocation7 + $0x18] sm:$0xff]
    %v129 = vld [vmem:[#allocation7 + $0x20] sm:$0xff]
    %v130 = vld [vmem:[#allocation7 + $0x28] sm:$0xff]
    %v131 = vld [vmem:[#allocation7 + $0x30] sm:$0xff]
    %v132 = vld [vmem:[#allocation7 + $0x38] sm:$0xff]
    %v133 = vld [vmem:[#allocation7 + $0x40] sm:$0xff]
    %v134 = vld [vmem:[#allocation7 + $0x48] sm:$0xff]
    %v135 = vld [vmem:[#allocation7 + $0x50] sm:$0xff]
    %v136 = vld [vmem:[#allocation7 + $0x58] sm:$0xff]
    %v137 = vld [vmem:[#allocation7 + $0x60] sm:$0xff]
    %v138 = vld [vmem:[#allocation7 + $0x68] sm:$0xff]
    %v139 = vld [vmem:[#allocation7 + $0x70] sm:$0xff]
    %v140 = vld [vmem:[#allocation7 + $0x78] sm:$0xff]
    %v141 = vld [vmem:[#allocation8] sm:$0xff]
    %v142 = vld [vmem:[#allocation8 + $0x8] sm:$0xff]
    %v143 = vld [vmem:[#allocation8 + $0x10] sm:$0xff]
    %v144 = vld [vmem:[#allocation8 + $0x18] sm:$0xff]
    %v145 = vld [vmem:[#allocation8 + $0x20] sm:$0xff]
    %v146 = vld [vmem:[#allocation8 + $0x28] sm:$0xff]
    %v147 = vld [vmem:[#allocation8 + $0x30] sm:$0xff]
    %v148 = vld [vmem:[#allocation8 + $0x38] sm:$0xff]
    %v149 = vld [vmem:[#allocation8 + $0x40] sm:$0xff]
    %v150 = vld [vmem:[#allocation8 + $0x48] sm:$0xff]
    %v151 = vld [vmem:[#allocation8 + $0x50] sm:$0xff]
    %v152 = vld [vmem:[#allocation8 + $0x58] sm:$0xff]
    %v153 = vld [vmem:[#allocation8 + $0x60] sm:$0xff]
    %v154 = vld [vmem:[#allocation8 + $0x68] sm:$0xff]
    %v155 = vld [vmem:[#allocation8 + $0x70] sm:$0xff]
    %v156 = vld [vmem:[#allocation8 + $0x78] sm:$0xff]
    %v157 = vld [vmem:[%s4] sm:$0x1]
    %v158 = vld [vmem:[%s5] sm:$0x1]
    %v159 = vld [vmem:[#allocation10] sm:$0x1]
    %160 = vmatprep.subr.mxu0 0.0
    %161 = vmatpush1.msra.mxu0 %v108
    %162 = vmatprep.subr.mxu0 0.0
    %163 = vmatpush1.msra.mxu0 %v107
    %164 = vmatprep.subr.mxu0 0.0
    %165 = vmatpush1.msra.mxu0 %v106
    %166 = vmatprep.subr.mxu0 0.0
    %167 = vmatpush1.msra.mxu0 %v105
    %168 = vmatprep.subr.mxu0 0.0
    %169 = vmatpush1.msra.mxu0 %v104
    %170 = vmatprep.subr.mxu0 0.0
    %171 = vmatpush1.msra.mxu0 %v103
    %172 = vmatprep.subr.mxu0 0.0
    %173 = vmatpush1.msra.mxu0 %v102
    %174 = vmatprep.subr.mxu0 0.0
    %175 = vmatpush1.msra.mxu0 %v101
    %176 = vmatprep.subr.mxu0 0.0
    %177 = vmatpush1.msra.mxu0 %v100
    %178 = vmatprep.subr.mxu0 0.0
    %179 = vmatpush1.msra.mxu0 %v99
    %180 = vmatprep.subr.mxu0 0.0
    %181 = vmatpush1.msra.mxu0 %v98
    %182 = vmatprep.subr.mxu0 0.0
    %183 = vmatpush1.msra.mxu0 %v97
    %184 = vmatprep.subr.mxu0 0.0
    %185 = vmatpush1.msra.mxu0 %v96
    %186 = vmatprep.subr.mxu0 0.0
    %187 = vmatpush1.msra.mxu0 %v95
    %188 = vmatprep.subr.mxu0 0.0
    %189 = vmatpush1.msra.mxu0 %v94
    %190 = vmatprep.subr.mxu0 0.0
    %191 = vmatpush1.msra.mxu0 %v93
    %192 = vmatprep.subr.mxu0 0.0
    %193 = vmatpush2.msra.mxu0 0.0
    %194 = vmatprep.subr.mxu0 0.0
    %195 = vmatpush2.msra.mxu0 0.0
    %196 = vmatprep.subr.mxu0 0.0
    %197 = vmatpush2.msra.mxu0 0.0
    %198 = vmatprep.subr.mxu0 0.0
    %199 = vmatpush2.msra.mxu0 0.0
    %200 = vmatprep.subr.mxu0 0.0
    %201 = vmatpush2.msra.mxu0 0.0
    %202 = vmatprep.subr.mxu0 0.0
    %203 = vmatpush2.msra.mxu0 0.0
    %204 = vmatprep.subr.mxu0 0.0
    %205 = vmatpush2.msra.mxu0 0.0
    %206 = vmatprep.subr.mxu0 0.0
    %207 = vmatpush2.msra.mxu0 0.0
    %208 = vmatprep.subr.mxu0 0.0
    %209 = vmatpush2.msra.mxu0 0.0
    %210 = vmatprep.subr.mxu0 0.0
    %211 = vmatpush2.msra.mxu0 0.0
    %212 = vmatprep.subr.mxu0 0.0
    %213 = vmatpush2.msra.mxu0 0.0
    %214 = vmatprep.subr.mxu0 0.0
    %215 = vmatpush2.msra.mxu0 0.0
    %216 = vmatprep.subr.mxu0 0.0
    %217 = vmatpush2.msra.mxu0 0.0
    %218 = vmatprep.subr.mxu0 0.0
    %219 = vmatpush2.msra.mxu0 0.0
    %220 = vmatprep.subr.mxu0 0.0
    %221 = vmatpush2.msra.mxu0 0.0
    %222 = vmatprep.subr.mxu0 0.0
    %223 = vmatpush2.msra.mxu0 0.0
    %224 = vmatprep.mubr.f32.mxu0 0.0
    %225 = vmatmul.mubr.f32.gmra.mxu0 %v159
    %v226 = vpop.f32.mrf.mxu0
    %v227 = vadd.f32 %v157, %v226
    %v228 = vpop.f32.mrf.mxu0
    %229 = vdwg.mxu0
    %230 = vmatprep.subr.mxu0 0.0
    %231 = vmatpush1.msra.mxu0 %v124
    %232 = vmatprep.subr.mxu0 0.0
    %233 = vmatpush1.msra.mxu0 %v123
    %234 = vmatprep.subr.mxu0 0.0
    %235 = vmatpush1.msra.mxu0 %v122
    %236 = vmatprep.subr.mxu0 0.0
    %237 = vmatpush1.msra.mxu0 %v121
    %238 = vmatprep.subr.mxu0 0.0
    %239 = vmatpush1.msra.mxu0 %v120
    %240 = vmatprep.subr.mxu0 0.0
    %241 = vmatpush1.msra.mxu0 %v119
    %242 = vmatprep.subr.mxu0 0.0
    %243 = vmatpush1.msra.mxu0 %v118
    %244 = vmatprep.subr.mxu0 0.0
    %245 = vmatpush1.msra.mxu0 %v117
    %246 = vmatprep.subr.mxu0 0.0
    %247 = vmatpush1.msra.mxu0 %v116
    %248 = vmatprep.subr.mxu0 0.0
    %249 = vmatpush1.msra.mxu0 %v115
    %250 = vmatprep.subr.mxu0 0.0
    %251 = vmatpush1.msra.mxu0 %v114
    %252 = vmatprep.subr.mxu0 0.0
    %253 = vmatpush1.msra.mxu0 %v113
    %254 = vmatprep.subr.mxu0 0.0
    %255 = vmatpush1.msra.mxu0 %v112
    %256 = vmatprep.subr.mxu0 0.0
    %257 = vmatpush1.msra.mxu0 %v111
    %258 = vmatprep.subr.mxu0 0.0
    %259 = vmatpush1.msra.mxu0 %v110
    %260 = vmatprep.subr.mxu0 0.0
    %261 = vmatpush1.msra.mxu0 %v109
    %262 = vmatprep.subr.mxu0 0.0
    %263 = vmatpush2.msra.mxu0 0.0
    %264 = vmatprep.subr.mxu0 0.0
    %265 = vmatpush2.msra.mxu0 0.0
    %266 = vmatprep.subr.mxu0 0.0
    %267 = vmatpush2.msra.mxu0 0.0
    %268 = vmatprep.subr.mxu0 0.0
    %269 = vmatpush2.msra.mxu0 0.0
    %270 = vmatprep.subr.mxu0 0.0
    %271 = vmatpush2.msra.mxu0 0.0
    %272 = vmatprep.subr.mxu0 0.0
    %273 = vmatpush2.msra.mxu0 0.0
    %274 = vmatprep.subr.mxu0 0.0
    %275 = vmatpush2.msra.mxu0 0.0
    %276 = vmatprep.subr.mxu0 0.0
    %277 = vmatpush2.msra.mxu0 0.0
    %278 = vmatprep.subr.mxu0 0.0
    %279 = vmatpush2.msra.mxu0 0.0
    %280 = vmatprep.subr.mxu0 0.0
    %281 = vmatpush2.msra.mxu0 0.0
    %282 = vmatprep.subr.mxu0 0.0
    %283 = vmatpush2.msra.mxu0 0.0
    %284 = vmatprep.subr.mxu0 0.0
    %285 = vmatpush2.msra.mxu0 0.0
    %286 = vmatprep.subr.mxu0 0.0
    %287 = vmatpush2.msra.mxu0 0.0
    %288 = vmatprep.subr.mxu0 0.0
    %289 = vmatpush2.msra.mxu0 0.0
    %290 = vmatprep.subr.mxu0 0.0
    %291 = vmatpush2.msra.mxu0 0.0
    %292 = vmatprep.subr.mxu0 0.0
    %293 = vmatpush2.msra.mxu0 0.0
    %294 = vmatprep.mubr.f32.mxu0 0.0
    %295 = vmatmul.mubr.f32.gmra.mxu0 %v227
    %v296 = vpop.f32.mrf.mxu0
    %v297 = vadd.f32 0.0, %v296
    %v298 = vpop.f32.mrf.mxu0
    %299 = vdwg.mxu0
    %v300 = vsub.f32 %v158, %v297
    %301 = vmatprep.subr.mxu0 0.0
    %302 = vmatpush1.msra.mxu0 %v140
    %303 = vmatprep.subr.mxu0 0.0
    %304 = vmatpush1.msra.mxu0 %v139
    %305 = vmatprep.subr.mxu0 0.0
    %306 = vmatpush1.msra.mxu0 %v138
    %307 = vmatprep.subr.mxu0 0.0
    %308 = vmatpush1.msra.mxu0 %v137
    %309 = vmatprep.subr.mxu0 0.0
    %310 = vmatpush1.msra.mxu0 %v136
    %311 = vmatprep.subr.mxu0 0.0
    %312 = vmatpush1.msra.mxu0 %v135
    %313 = vmatprep.subr.mxu0 0.0
    %314 = vmatpush1.msra.mxu0 %v134
    %315 = vmatprep.subr.mxu0 0.0
    %316 = vmatpush1.msra.mxu0 %v133
    %317 = vmatprep.subr.mxu0 0.0
    %318 = vmatpush1.msra.mxu0 %v132
    %319 = vmatprep.subr.mxu0 0.0
    %320 = vmatpush1.msra.mxu0 %v131
    %321 = vmatprep.subr.mxu0 0.0
    %322 = vmatpush1.msra.mxu0 %v130
    %323 = vmatprep.subr.mxu0 0.0
    %324 = vmatpush1.msra.mxu0 %v129
    %325 = vmatprep.subr.mxu0 0.0
    %326 = vmatpush1.msra.mxu0 %v128
    %327 = vmatprep.subr.mxu0 0.0
    %328 = vmatpush1.msra.mxu0 %v127
    %329 = vmatprep.subr.mxu0 0.0
    %330 = vmatpush1.msra.mxu0 %v126
    %331 = vmatprep.subr.mxu0 0.0
    %332 = vmatpush1.msra.mxu0 %v125
    %333 = vmatprep.subr.mxu0 0.0
    %334 = vmatpush2.msra.mxu0 0.0
    %335 = vmatprep.subr.mxu0 0.0
    %336 = vmatpush2.msra.mxu0 0.0
    %337 = vmatprep.subr.mxu0 0.0
    %338 = vmatpush2.msra.mxu0 0.0
    %339 = vmatprep.subr.mxu0 0.0
    %340 = vmatpush2.msra.mxu0 0.0
    %341 = vmatprep.subr.mxu0 0.0
    %342 = vmatpush2.msra.mxu0 0.0
    %343 = vmatprep.subr.mxu0 0.0
    %344 = vmatpush2.msra.mxu0 0.0
    %345 = vmatprep.subr.mxu0 0.0
    %346 = vmatpush2.msra.mxu0 0.0
    %347 = vmatprep.subr.mxu0 0.0
    %348 = vmatpush2.msra.mxu0 0.0
    %349 = vmatprep.subr.mxu0 0.0
    %350 = vmatpush2.msra.mxu0 0.0
    %351 = vmatprep.subr.mxu0 0.0
    %352 = vmatpush2.msra.mxu0 0.0
    %353 = vmatprep.subr.mxu0 0.0
    %354 = vmatpush2.msra.mxu0 0.0
    %355 = vmatprep.subr.mxu0 0.0
    %356 = vmatpush2.msra.mxu0 0.0
    %357 = vmatprep.subr.mxu0 0.0
    %358 = vmatpush2.msra.mxu0 0.0
    %359 = vmatprep.subr.mxu0 0.0
    %360 = vmatpush2.msra.mxu0 0.0
    %361 = vmatprep.subr.mxu0 0.0
    %362 = vmatpush2.msra.mxu0 0.0
    %363 = vmatprep.subr.mxu0 0.0
    %364 = vmatpush2.msra.mxu0 0.0
    %365 = vmatprep.mubr.f32.mxu0 0.0
    %366 = vmatmul.mubr.f32.gmra.mxu0 %v300
    %v367 = vpop.f32.mrf.mxu0
    %v368 = vadd.f32 0.0, %v367
    %v369 = vpop.f32.mrf.mxu0
    %370 = vdwg.mxu0
    %371 = vmatprep.subr.mxu0 0.0
    %372 = vmatpush1.msra.mxu0 %v156
    %373 = vmatprep.subr.mxu0 0.0
    %374 = vmatpush1.msra.mxu0 %v155
    %375 = vmatprep.subr.mxu0 0.0
    %376 = vmatpush1.msra.mxu0 %v154
    %377 = vmatprep.subr.mxu0 0.0
    %378 = vmatpush1.msra.mxu0 %v153
    %379 = vmatprep.subr.mxu0 0.0
    %380 = vmatpush1.msra.mxu0 %v152
    %381 = vmatprep.subr.mxu0 0.0
    %382 = vmatpush1.msra.mxu0 %v151
    %383 = vmatprep.subr.mxu0 0.0
    %384 = vmatpush1.msra.mxu0 %v150
    %385 = vmatprep.subr.mxu0 0.0
    %386 = vmatpush1.msra.mxu0 %v149
    %387 = vmatprep.subr.mxu0 0.0
    %388 = vmatpush1.msra.mxu0 %v148
    %389 = vmatprep.subr.mxu0 0.0
    %390 = vmatpush1.msra.mxu0 %v147
    %391 = vmatprep.subr.mxu0 0.0
    %392 = vmatpush1.msra.mxu0 %v146
    %393 = vmatprep.subr.mxu0 0.0
    %394 = vmatpush1.msra.mxu0 %v145
    %395 = vmatprep.subr.mxu0 0.0
    %396 = vmatpush1.msra.mxu0 %v144
    %397 = vmatprep.subr.mxu0 0.0
    %398 = vmatpush1.msra.mxu0 %v143
    %399 = vmatprep.subr.mxu0 0.0
    %400 = vmatpush1.msra.mxu0 %v142
    %401 = vmatprep.subr.mxu0 0.0
    %402 = vmatpush1.msra.mxu0 %v141
    %403 = vmatprep.subr.mxu0 0.0
    %404 = vmatpush2.msra.mxu0 0.0
    %405 = vmatprep.subr.mxu0 0.0
    %406 = vmatpush2.msra.mxu0 0.0
    %407 = vmatprep.subr.mxu0 0.0
    %408 = vmatpush2.msra.mxu0 0.0
    %409 = vmatprep.subr.mxu0 0.0
    %410 = vmatpush2.msra.mxu0 0.0
    %411 = vmatprep.subr.mxu0 0.0
    %412 = vmatpush2.msra.mxu0 0.0
    %413 = vmatprep.subr.mxu0 0.0
    %414 = vmatpush2.msra.mxu0 0.0
    %415 = vmatprep.subr.mxu0 0.0
    %416 = vmatpush2.msra.mxu0 0.0
    %417 = vmatprep.subr.mxu0 0.0
    %418 = vmatpush2.msra.mxu0 0.0
    %419 = vmatprep.subr.mxu0 0.0
    %420 = vmatpush2.msra.mxu0 0.0
    %421 = vmatprep.subr.mxu0 0.0
    %422 = vmatpush2.msra.mxu0 0.0
    %423 = vmatprep.subr.mxu0 0.0
    %424 = vmatpush2.msra.mxu0 0.0
    %425 = vmatprep.subr.mxu0 0.0
    %426 = vmatpush2.msra.mxu0 0.0
    %427 = vmatprep.subr.mxu0 0.0
    %428 = vmatpush2.msra.mxu0 0.0
    %429 = vmatprep.subr.mxu0 0.0
    %430 = vmatpush2.msra.mxu0 0.0
    %431 = vmatprep.subr.mxu0 0.0
    %432 = vmatpush2.msra.mxu0 0.0
    %433 = vmatprep.subr.mxu0 0.0
    %434 = vmatpush2.msra.mxu0 0.0
    %435 = vmatprep.mubr.f32.mxu0 0.0
    %436 = vmatmul.mubr.f32.gmra.mxu0 %v368
    %v437 = vpop.f32.mrf.mxu0
    %v438 = vadd.f32 0.0, %v437
    %v439 = vpop.f32.mrf.mxu0
    %440 = vdwg.mxu0
    %441 = vmatprep.subr.mxu0 0.0
    %442 = vmatpush1.msra.mxu0 %v108
    %443 = vmatprep.subr.mxu0 0.0
    %444 = vmatpush1.msra.mxu0 %v107
    %445 = vmatprep.subr.mxu0 0.0
    %446 = vmatpush1.msra.mxu0 %v106
    %447 = vmatprep.subr.mxu0 0.0
    %448 = vmatpush1.msra.mxu0 %v105
    %449 = vmatprep.subr.mxu0 0.0
    %450 = vmatpush1.msra.mxu0 %v104
    %451 = vmatprep.subr.mxu0 0.0
    %452 = vmatpush1.msra.mxu0 %v103
    %453 = vmatprep.subr.mxu0 0.0
    %454 = vmatpush1.msra.mxu0 %v102
    %455 = vmatprep.subr.mxu0 0.0
    %456 = vmatpush1.msra.mxu0 %v101
    %457 = vmatprep.subr.mxu0 0.0
    %458 = vmatpush1.msra.mxu0 %v100
    %459 = vmatprep.subr.mxu0 0.0
    %460 = vmatpush1.msra.mxu0 %v99
    %461 = vmatprep.subr.mxu0 0.0
    %462 = vmatpush1.msra.mxu0 %v98
    %463 = vmatprep.subr.mxu0 0.0
    %464 = vmatpush1.msra.mxu0 %v97
    %465 = vmatprep.subr.mxu0 0.0
    %466 = vmatpush1.msra.mxu0 %v96
    %467 = vmatprep.subr.mxu0 0.0
    %468 = vmatpush1.msra.mxu0 %v95
    %469 = vmatprep.subr.mxu0 0.0
    %470 = vmatpush1.msra.mxu0 %v94
    %471 = vmatprep.subr.mxu0 0.0
    %472 = vmatpush1.msra.mxu0 %v93
    %473 = vmatprep.subr.mxu0 0.0
    %474 = vmatpush2.msra.mxu0 0.0
    %475 = vmatprep.subr.mxu0 0.0
    %476 = vmatpush2.msra.mxu0 0.0
    %477 = vmatprep.subr.mxu0 0.0
    %478 = vmatpush2.msra.mxu0 0.0
    %479 = vmatprep.subr.mxu0 0.0
    %480 = vmatpush2.msra.mxu0 0.0
    %481 = vmatprep.subr.mxu0 0.0
    %482 = vmatpush2.msra.mxu0 0.0
    %483 = vmatprep.subr.mxu0 0.0
    %484 = vmatpush2.msra.mxu0 0.0
    %485 = vmatprep.subr.mxu0 0.0
    %486 = vmatpush2.msra.mxu0 0.0
    %487 = vmatprep.subr.mxu0 0.0
    %488 = vmatpush2.msra.mxu0 0.0
    %489 = vmatprep.subr.mxu0 0.0
    %490 = vmatpush2.msra.mxu0 0.0
    %491 = vmatprep.subr.mxu0 0.0
    %492 = vmatpush2.msra.mxu0 0.0
    %493 = vmatprep.subr.mxu0 0.0
    %494 = vmatpush2.msra.mxu0 0.0
    %495 = vmatprep.subr.mxu0 0.0
    %496 = vmatpush2.msra.mxu0 0.0
    %497 = vmatprep.subr.mxu0 0.0
    %498 = vmatpush2.msra.mxu0 0.0
    %499 = vmatprep.subr.mxu0 0.0
    %500 = vmatpush2.msra.mxu0 0.0
    %501 = vmatprep.subr.mxu0 0.0
    %502 = vmatpush2.msra.mxu0 0.0
    %503 = vmatprep.subr.mxu0 0.0
    %504 = vmatpush2.msra.mxu0 0.0
    %505 = vmatprep.mubr.f32.mxu0 0.0
    %506 = vmatmul.mubr.f32.gmra.mxu0 %v227
    %v507 = vpop.f32.mrf.mxu0
    %v508 = vadd.f32 %v438, %v507
    %v509 = vpop.f32.mrf.mxu0
    %510 = vdwg.mxu0
    %v511 = vadd.f32 %v508, %v157
    %512 = vmatprep.subr.mxu0 0.0
    %513 = vmatpush1.msra.mxu0 %v108
    %514 = vmatprep.subr.mxu0 0.0
    %515 = vmatpush1.msra.mxu0 %v107
    %516 = vmatprep.subr.mxu0 0.0
    %517 = vmatpush1.msra.mxu0 %v106
    %518 = vmatprep.subr.mxu0 0.0
    %519 = vmatpush1.msra.mxu0 %v105
    %520 = vmatprep.subr.mxu0 0.0
    %521 = vmatpush1.msra.mxu0 %v104
    %522 = vmatprep.subr.mxu0 0.0
    %523 = vmatpush1.msra.mxu0 %v103
    %524 = vmatprep.subr.mxu0 0.0
    %525 = vmatpush1.msra.mxu0 %v102
    %526 = vmatprep.subr.mxu0 0.0
    %527 = vmatpush1.msra.mxu0 %v101
    %528 = vmatprep.subr.mxu0 0.0
    %529 = vmatpush1.msra.mxu0 %v100
    %530 = vmatprep.subr.mxu0 0.0
    %531 = vmatpush1.msra.mxu0 %v99
    %532 = vmatprep.subr.mxu0 0.0
    %533 = vmatpush1.msra.mxu0 %v98
    %534 = vmatprep.subr.mxu0 0.0
    %535 = vmatpush1.msra.mxu0 %v97
    %536 = vmatprep.subr.mxu0 0.0
    %537 = vmatpush1.msra.mxu0 %v96
    %538 = vmatprep.subr.mxu0 0.0
    %539 = vmatpush1.msra.mxu0 %v95
    %540 = vmatprep.subr.mxu0 0.0
    %541 = vmatpush1.msra.mxu0 %v94
    %542 = vmatprep.subr.mxu0 0.0
    %543 = vmatpush1.msra.mxu0 %v93
    %544 = vmatprep.subr.mxu0 0.0
    %545 = vmatpush2.msra.mxu0 0.0
    %546 = vmatprep.subr.mxu0 0.0
    %547 = vmatpush2.msra.mxu0 0.0
    %548 = vmatprep.subr.mxu0 0.0
    %549 = vmatpush2.msra.mxu0 0.0
    %550 = vmatprep.subr.mxu0 0.0
    %551 = vmatpush2.msra.mxu0 0.0
    %552 = vmatprep.subr.mxu0 0.0
    %553 = vmatpush2.msra.mxu0 0.0
    %554 = vmatprep.subr.mxu0 0.0
    %555 = vmatpush2.msra.mxu0 0.0
    %556 = vmatprep.subr.mxu0 0.0
    %557 = vmatpush2.msra.mxu0 0.0
    %558 = vmatprep.subr.mxu0 0.0
    %559 = vmatpush2.msra.mxu0 0.0
    %560 = vmatprep.subr.mxu0 0.0
    %561 = vmatpush2.msra.mxu0 0.0
    %562 = vmatprep.subr.mxu0 0.0
    %563 = vmatpush2.msra.mxu0 0.0
    %564 = vmatprep.subr.mxu0 0.0
    %565 = vmatpush2.msra.mxu0 0.0
    %566 = vmatprep.subr.mxu0 0.0
    %567 = vmatpush2.msra.mxu0 0.0
    %568 = vmatprep.subr.mxu0 0.0
    %569 = vmatpush2.msra.mxu0 0.0
    %570 = vmatprep.subr.mxu0 0.0
    %571 = vmatpush2.msra.mxu0 0.0
    %572 = vmatprep.subr.mxu0 0.0
    %573 = vmatpush2.msra.mxu0 0.0
    %574 = vmatprep.subr.mxu0 0.0
    %575 = vmatpush2.msra.mxu0 0.0
    %576 = vmatprep.mubr.f32.mxu0 0.0
    %577 = vmatmul.mubr.f32.gmra.mxu0 %v511
    %v578 = vpop.f32.mrf.mxu0
    %v579 = vadd.f32 %v157, %v578
    %v580 = vpop.f32.mrf.mxu0
    %581 = vdwg.mxu0
    %582 = vmatprep.subr.mxu0 0.0
    %583 = vmatpush1.msra.mxu0 %v124
    %584 = vmatprep.subr.mxu0 0.0
    %585 = vmatpush1.msra.mxu0 %v123
    %586 = vmatprep.subr.mxu0 0.0
    %587 = vmatpush1.msra.mxu0 %v122
    %588 = vmatprep.subr.mxu0 0.0
    %589 = vmatpush1.msra.mxu0 %v121
    %590 = vmatprep.subr.mxu0 0.0
    %591 = vmatpush1.msra.mxu0 %v120
    %592 = vmatprep.subr.mxu0 0.0
    %593 = vmatpush1.msra.mxu0 %v119
    %594 = vmatprep.subr.mxu0 0.0
    %595 = vmatpush1.msra.mxu0 %v118
    %596 = vmatprep.subr.mxu0 0.0
    %597 = vmatpush1.msra.mxu0 %v117
    %598 = vmatprep.subr.mxu0 0.0
    %599 = vmatpush1.msra.mxu0 %v116
    %600 = vmatprep.subr.mxu0 0.0
    %601 = vmatpush1.msra.mxu0 %v115
    %602 = vmatprep.subr.mxu0 0.0
    %603 = vmatpush1.msra.mxu0 %v114
    %604 = vmatprep.subr.mxu0 0.0
    %605 = vmatpush1.msra.mxu0 %v113
    %606 = vmatprep.subr.mxu0 0.0
    %607 = vmatpush1.msra.mxu0 %v112
    %608 = vmatprep.subr.mxu0 0.0
    %609 = vmatpush1.msra.mxu0 %v111
    %610 = vmatprep.subr.mxu0 0.0
    %611 = vmatpush1.msra.mxu0 %v110
    %612 = vmatprep.subr.mxu0 0.0
    %613 = vmatpush1.msra.mxu0 %v109
    %614 = vmatprep.subr.mxu0 0.0
    %615 = vmatpush2.msra.mxu0 0.0
    %616 = vmatprep.subr.mxu0 0.0
    %617 = vmatpush2.msra.mxu0 0.0
    %618 = vmatprep.subr.mxu0 0.0
    %619 = vmatpush2.msra.mxu0 0.0
    %620 = vmatprep.subr.mxu0 0.0
    %621 = vmatpush2.msra.mxu0 0.0
    %622 = vmatprep.subr.mxu0 0.0
    %623 = vmatpush2.msra.mxu0 0.0
    %624 = vmatprep.subr.mxu0 0.0
    %625 = vmatpush2.msra.mxu0 0.0
    %626 = vmatprep.subr.mxu0 0.0
    %627 = vmatpush2.msra.mxu0 0.0
    %628 = vmatprep.subr.mxu0 0.0
    %629 = vmatpush2.msra.mxu0 0.0
    %630 = vmatprep.subr.mxu0 0.0
    %631 = vmatpush2.msra.mxu0 0.0
    %632 = vmatprep.subr.mxu0 0.0
    %633 = vmatpush2.msra.mxu0 0.0
    %634 = vmatprep.subr.mxu0 0.0
    %635 = vmatpush2.msra.mxu0 0.0
    %636 = vmatprep.subr.mxu0 0.0
    %637 = vmatpush2.msra.mxu0 0.0
    %638 = vmatprep.subr.mxu0 0.0
    %639 = vmatpush2.msra.mxu0 0.0
    %640 = vmatprep.subr.mxu0 0.0
    %641 = vmatpush2.msra.mxu0 0.0
    %642 = vmatprep.subr.mxu0 0.0
    %643 = vmatpush2.msra.mxu0 0.0
    %644 = vmatprep.subr.mxu0 0.0
    %645 = vmatpush2.msra.mxu0 0.0
    %646 = vmatprep.mubr.f32.mxu0 0.0
    %647 = vmatmul.mubr.f32.gmra.mxu0 %v579
    %v648 = vpop.f32.mrf.mxu0
    %v649 = vadd.f32 0.0, %v648
    %v650 = vpop.f32.mrf.mxu0
    %651 = vdwg.mxu0
    %v652 = vsub.f32 %v158, %v649
    %653 = vmatprep.subr.mxu0 0.0
    %654 = vmatpush1.msra.mxu0 %v140
    %655 = vmatprep.subr.mxu0 0.0
    %656 = vmatpush1.msra.mxu0 %v139
    %657 = vmatprep.subr.mxu0 0.0
    %658 = vmatpush1.msra.mxu0 %v138
    %659 = vmatprep.subr.mxu0 0.0
    %660 = vmatpush1.msra.mxu0 %v137
    %661 = vmatprep.subr.mxu0 0.0
    %662 = vmatpush1.msra.mxu0 %v136
    %663 = vmatprep.subr.mxu0 0.0
    %664 = vmatpush1.msra.mxu0 %v135
    %665 = vmatprep.subr.mxu0 0.0
    %666 = vmatpush1.msra.mxu0 %v134
    %667 = vmatprep.subr.mxu0 0.0
    %668 = vmatpush1.msra.mxu0 %v133
    %669 = vmatprep.subr.mxu0 0.0
    %670 = vmatpush1.msra.mxu0 %v132
    %671 = vmatprep.subr.mxu0 0.0
    %672 = vmatpush1.msra.mxu0 %v131
    %673 = vmatprep.subr.mxu0 0.0
    %674 = vmatpush1.msra.mxu0 %v130
    %675 = vmatprep.subr.mxu0 0.0
    %676 = vmatpush1.msra.mxu0 %v129
    %677 = vmatprep.subr.mxu0 0.0
    %678 = vmatpush1.msra.mxu0 %v128
    %679 = vmatprep.subr.mxu0 0.0
    %680 = vmatpush1.msra.mxu0 %v127
    %681 = vmatprep.subr.mxu0 0.0
    %682 = vmatpush1.msra.mxu0 %v126
    %683 = vmatprep.subr.mxu0 0.0
    %684 = vmatpush1.msra.mxu0 %v125
    %685 = vmatprep.subr.mxu0 0.0
    %686 = vmatpush2.msra.mxu0 0.0
    %687 = vmatprep.subr.mxu0 0.0
    %688 = vmatpush2.msra.mxu0 0.0
    %689 = vmatprep.subr.mxu0 0.0
    %690 = vmatpush2.msra.mxu0 0.0
    %691 = vmatprep.subr.mxu0 0.0
    %692 = vmatpush2.msra.mxu0 0.0
    %693 = vmatprep.subr.mxu0 0.0
    %694 = vmatpush2.msra.mxu0 0.0
    %695 = vmatprep.subr.mxu0 0.0
    %696 = vmatpush2.msra.mxu0 0.0
    %697 = vmatprep.subr.mxu0 0.0
    %698 = vmatpush2.msra.mxu0 0.0
    %699 = vmatprep.subr.mxu0 0.0
    %700 = vmatpush2.msra.mxu0 0.0
    %701 = vmatprep.subr.mxu0 0.0
    %702 = vmatpush2.msra.mxu0 0.0
    %703 = vmatprep.subr.mxu0 0.0
    %704 = vmatpush2.msra.mxu0 0.0
    %705 = vmatprep.subr.mxu0 0.0
    %706 = vmatpush2.msra.mxu0 0.0
    %707 = vmatprep.subr.mxu0 0.0
    %708 = vmatpush2.msra.mxu0 0.0
    %709 = vmatprep.subr.mxu0 0.0
    %710 = vmatpush2.msra.mxu0 0.0
    %711 = vmatprep.subr.mxu0 0.0
    %712 = vmatpush2.msra.mxu0 0.0
    %713 = vmatprep.subr.mxu0 0.0
    %714 = vmatpush2.msra.mxu0 0.0
    %715 = vmatprep.subr.mxu0 0.0
    %716 = vmatpush2.msra.mxu0 0.0
    %717 = vmatprep.mubr.f32.mxu0 0.0
    %718 = vmatmul.mubr.f32.gmra.mxu0 %v652
    %v719 = vpop.f32.mrf.mxu0
    %v720 = vadd.f32 0.0, %v719
    %v721 = vpop.f32.mrf.mxu0
    %722 = vdwg.mxu0
    %723 = vmatprep.subr.mxu0 0.0
    %724 = vmatpush1.msra.mxu0 %v156
    %725 = vmatprep.subr.mxu0 0.0
    %726 = vmatpush1.msra.mxu0 %v155
    %727 = vmatprep.subr.mxu0 0.0
    %728 = vmatpush1.msra.mxu0 %v154
    %729 = vmatprep.subr.mxu0 0.0
    %730 = vmatpush1.msra.mxu0 %v153
    %731 = vmatprep.subr.mxu0 0.0
    %732 = vmatpush1.msra.mxu0 %v152
    %733 = vmatprep.subr.mxu0 0.0
    %734 = vmatpush1.msra.mxu0 %v151
    %735 = vmatprep.subr.mxu0 0.0
    %736 = vmatpush1.msra.mxu0 %v150
    %737 = vmatprep.subr.mxu0 0.0
    %738 = vmatpush1.msra.mxu0 %v149
    %739 = vmatprep.subr.mxu0 0.0
    %740 = vmatpush1.msra.mxu0 %v148
    %741 = vmatprep.subr.mxu0 0.0
    %742 = vmatpush1.msra.mxu0 %v147
    %743 = vmatprep.subr.mxu0 0.0
    %744 = vmatpush1.msra.mxu0 %v146
    %745 = vmatprep.subr.mxu0 0.0
    %746 = vmatpush1.msra.mxu0 %v145
    %747 = vmatprep.subr.mxu0 0.0
    %748 = vmatpush1.msra.mxu0 %v144
    %749 = vmatprep.subr.mxu0 0.0
    %750 = vmatpush1.msra.mxu0 %v143
    %751 = vmatprep.subr.mxu0 0.0
    %752 = vmatpush1.msra.mxu0 %v142
    %753 = vmatprep.subr.mxu0 0.0
    %754 = vmatpush1.msra.mxu0 %v141
    %755 = vmatprep.subr.mxu0 0.0
    %756 = vmatpush2.msra.mxu0 0.0
    %757 = vmatprep.subr.mxu0 0.0
    %758 = vmatpush2.msra.mxu0 0.0
    %759 = vmatprep.subr.mxu0 0.0
    %760 = vmatpush2.msra.mxu0 0.0
    %761 = vmatprep.subr.mxu0 0.0
    %762 = vmatpush2.msra.mxu0 0.0
    %763 = vmatprep.subr.mxu0 0.0
    %764 = vmatpush2.msra.mxu0 0.0
    %765 = vmatprep.subr.mxu0 0.0
    %766 = vmatpush2.msra.mxu0 0.0
    %767 = vmatprep.subr.mxu0 0.0
    %768 = vmatpush2.msra.mxu0 0.0
    %769 = vmatprep.subr.mxu0 0.0
    %770 = vmatpush2.msra.mxu0 0.0
    %771 = vmatprep.subr.mxu0 0.0
    %772 = vmatpush2.msra.mxu0 0.0
    %773 = vmatprep.subr.mxu0 0.0
    %774 = vmatpush2.msra.mxu0 0.0
    %775 = vmatprep.subr.mxu0 0.0
    %776 = vmatpush2.msra.mxu0 0.0
    %777 = vmatprep.subr.mxu0 0.0
    %778 = vmatpush2.msra.mxu0 0.0
    %779 = vmatprep.subr.mxu0 0.0
    %780 = vmatpush2.msra.mxu0 0.0
    %781 = vmatprep.subr.mxu0 0.0
    %782 = vmatpush2.msra.mxu0 0.0
    %783 = vmatprep.subr.mxu0 0.0
    %784 = vmatpush2.msra.mxu0 0.0
    %785 = vmatprep.subr.mxu0 0.0
    %786 = vmatpush2.msra.mxu0 0.0
    %787 = vmatprep.mubr.f32.mxu0 0.0
    %788 = vmatmul.mubr.f32.gmra.mxu0 %v720
    %v789 = vpop.f32.mrf.mxu0
    %v790 = vadd.f32 0.0, %v789
    %v791 = vpop.f32.mrf.mxu0
    %792 = vdwg.mxu0
    %793 = vmatprep.subr.mxu0 0.0
    %794 = vmatpush1.msra.mxu0 %v108
    %795 = vmatprep.subr.mxu0 0.0
    %796 = vmatpush1.msra.mxu0 %v107
    %797 = vmatprep.subr.mxu0 0.0
    %798 = vmatpush1.msra.mxu0 %v106
    %799 = vmatprep.subr.mxu0 0.0
    %800 = vmatpush1.msra.mxu0 %v105
    %801 = vmatprep.subr.mxu0 0.0
    %802 = vmatpush1.msra.mxu0 %v104
    %803 = vmatprep.subr.mxu0 0.0
    %804 = vmatpush1.msra.mxu0 %v103
    %805 = vmatprep.subr.mxu0 0.0
    %806 = vmatpush1.msra.mxu0 %v102
    %807 = vmatprep.subr.mxu0 0.0
    %808 = vmatpush1.msra.mxu0 %v101
    %809 = vmatprep.subr.mxu0 0.0
    %810 = vmatpush1.msra.mxu0 %v100
    %811 = vmatprep.subr.mxu0 0.0
    %812 = vmatpush1.msra.mxu0 %v99
    %813 = vmatprep.subr.mxu0 0.0
    %814 = vmatpush1.msra.mxu0 %v98
    %815 = vmatprep.subr.mxu0 0.0
    %816 = vmatpush1.msra.mxu0 %v97
    %817 = vmatprep.subr.mxu0 0.0
    %818 = vmatpush1.msra.mxu0 %v96
    %819 = vmatprep.subr.mxu0 0.0
    %820 = vmatpush1.msra.mxu0 %v95
    %821 = vmatprep.subr.mxu0 0.0
    %822 = vmatpush1.msra.mxu0 %v94
    %823 = vmatprep.subr.mxu0 0.0
    %824 = vmatpush1.msra.mxu0 %v93
    %825 = vmatprep.subr.mxu0 0.0
    %826 = vmatpush2.msra.mxu0 0.0
    %827 = vmatprep.subr.mxu0 0.0
    %828 = vmatpush2.msra.mxu0 0.0
    %829 = vmatprep.subr.mxu0 0.0
    %830 = vmatpush2.msra.mxu0 0.0
    %831 = vmatprep.subr.mxu0 0.0
    %832 = vmatpush2.msra.mxu0 0.0
    %833 = vmatprep.subr.mxu0 0.0
    %834 = vmatpush2.msra.mxu0 0.0
    %835 = vmatprep.subr.mxu0 0.0
    %836 = vmatpush2.msra.mxu0 0.0
    %837 = vmatprep.subr.mxu0 0.0
    %838 = vmatpush2.msra.mxu0 0.0
    %839 = vmatprep.subr.mxu0 0.0
    %840 = vmatpush2.msra.mxu0 0.0
    %841 = vmatprep.subr.mxu0 0.0
    %842 = vmatpush2.msra.mxu0 0.0
    %843 = vmatprep.subr.mxu0 0.0
    %844 = vmatpush2.msra.mxu0 0.0
    %845 = vmatprep.subr.mxu0 0.0
    %846 = vmatpush2.msra.mxu0 0.0
    %847 = vmatprep.subr.mxu0 0.0
    %848 = vmatpush2.msra.mxu0 0.0
    %849 = vmatprep.subr.mxu0 0.0
    %850 = vmatpush2.msra.mxu0 0.0
    %851 = vmatprep.subr.mxu0 0.0
    %852 = vmatpush2.msra.mxu0 0.0
    %853 = vmatprep.subr.mxu0 0.0
    %854 = vmatpush2.msra.mxu0 0.0
    %855 = vmatprep.subr.mxu0 0.0
    %856 = vmatpush2.msra.mxu0 0.0
    %857 = vmatprep.mubr.f32.mxu0 0.0
    %858 = vmatmul.mubr.f32.gmra.mxu0 %v579
    %v859 = vpop.f32.mrf.mxu0
    %v860 = vadd.f32 %v790, %v859
    %v861 = vpop.f32.mrf.mxu0
    %862 = vdwg.mxu0
    %v863 = vadd.f32 %v860, %v157
    %864 = vmatprep.subr.mxu0 0.0
    %865 = vmatpush1.msra.mxu0 %v108
    %866 = vmatprep.subr.mxu0 0.0
    %867 = vmatpush1.msra.mxu0 %v107
    %868 = vmatprep.subr.mxu0 0.0
    %869 = vmatpush1.msra.mxu0 %v106
    %870 = vmatprep.subr.mxu0 0.0
    %871 = vmatpush1.msra.mxu0 %v105
    %872 = vmatprep.subr.mxu0 0.0
    %873 = vmatpush1.msra.mxu0 %v104
    %874 = vmatprep.subr.mxu0 0.0
    %875 = vmatpush1.msra.mxu0 %v103
    %876 = vmatprep.subr.mxu0 0.0
    %877 = vmatpush1.msra.mxu0 %v102
    %878 = vmatprep.subr.mxu0 0.0
    %879 = vmatpush1.msra.mxu0 %v101
    %880 = vmatprep.subr.mxu0 0.0
    %881 = vmatpush1.msra.mxu0 %v100
    %882 = vmatprep.subr.mxu0 0.0
    %883 = vmatpush1.msra.mxu0 %v99
    %884 = vmatprep.subr.mxu0 0.0
    %885 = vmatpush1.msra.mxu0 %v98
    %886 = vmatprep.subr.mxu0 0.0
    %887 = vmatpush1.msra.mxu0 %v97
    %888 = vmatprep.subr.mxu0 0.0
    %889 = vmatpush1.msra.mxu0 %v96
    %890 = vmatprep.subr.mxu0 0.0
    %891 = vmatpush1.msra.mxu0 %v95
    %892 = vmatprep.subr.mxu0 0.0
    %893 = vmatpush1.msra.mxu0 %v94
    %894 = vmatprep.subr.mxu0 0.0
    %895 = vmatpush1.msra.mxu0 %v93
    %896 = vmatprep.subr.mxu0 0.0
    %897 = vmatpush2.msra.mxu0 0.0
    %898 = vmatprep.subr.mxu0 0.0
    %899 = vmatpush2.msra.mxu0 0.0
    %900 = vmatprep.subr.mxu0 0.0
    %901 = vmatpush2.msra.mxu0 0.0
    %902 = vmatprep.subr.mxu0 0.0
    %903 = vmatpush2.msra.mxu0 0.0
    %904 = vmatprep.subr.mxu0 0.0
    %905 = vmatpush2.msra.mxu0 0.0
    %906 = vmatprep.subr.mxu0 0.0
    %907 = vmatpush2.msra.mxu0 0.0
    %908 = vmatprep.subr.mxu0 0.0
    %909 = vmatpush2.msra.mxu0 0.0
    %910 = vmatprep.subr.mxu0 0.0
    %911 = vmatpush2.msra.mxu0 0.0
    %912 = vmatprep.subr.mxu0 0.0
    %913 = vmatpush2.msra.mxu0 0.0
    %914 = vmatprep.subr.mxu0 0.0
    %915 = vmatpush2.msra.mxu0 0.0
    %916 = vmatprep.subr.mxu0 0.0
    %917 = vmatpush2.msra.mxu0 0.0
    %918 = vmatprep.subr.mxu0 0.0
    %919 = vmatpush2.msra.mxu0 0.0
    %920 = vmatprep.subr.mxu0 0.0
    %921 = vmatpush2.msra.mxu0 0.0
    %922 = vmatprep.subr.mxu0 0.0
    %923 = vmatpush2.msra.mxu0 0.0
    %924 = vmatprep.subr.mxu0 0.0
    %925 = vmatpush2.msra.mxu0 0.0
    %926 = vmatprep.subr.mxu0 0.0
    %927 = vmatpush2.msra.mxu0 0.0
    %928 = vmatprep.mubr.f32.mxu0 0.0
    %929 = vmatmul.mubr.f32.gmra.mxu0 %v863
    %v930 = vpop.f32.mrf.mxu0
    %v931 = vadd.f32 %v157, %v930
    %v932 = vpop.f32.mrf.mxu0
    %933 = vdwg.mxu0
    %934 = vmatprep.subr.mxu0 0.0
    %935 = vmatpush1.msra.mxu0 %v124
    %936 = vmatprep.subr.mxu0 0.0
    %937 = vmatpush1.msra.mxu0 %v123
    %938 = vmatprep.subr.mxu0 0.0
    %939 = vmatpush1.msra.mxu0 %v122
    %940 = vmatprep.subr.mxu0 0.0
    %941 = vmatpush1.msra.mxu0 %v121
    %942 = vmatprep.subr.mxu0 0.0
    %943 = vmatpush1.msra.mxu0 %v120
    %944 = vmatprep.subr.mxu0 0.0
    %945 = vmatpush1.msra.mxu0 %v119
    %946 = vmatprep.subr.mxu0 0.0
    %947 = vmatpush1.msra.mxu0 %v118
    %948 = vmatprep.subr.mxu0 0.0
    %949 = vmatpush1.msra.mxu0 %v117
    %950 = vmatprep.subr.mxu0 0.0
    %951 = vmatpush1.msra.mxu0 %v116
    %952 = vmatprep.subr.mxu0 0.0
    %953 = vmatpush1.msra.mxu0 %v115
    %954 = vmatprep.subr.mxu0 0.0
    %955 = vmatpush1.msra.mxu0 %v114
    %956 = vmatprep.subr.mxu0 0.0
    %957 = vmatpush1.msra.mxu0 %v113
    %958 = vmatprep.subr.mxu0 0.0
    %959 = vmatpush1.msra.mxu0 %v112
    %960 = vmatprep.subr.mxu0 0.0
    %961 = vmatpush1.msra.mxu0 %v111
    %962 = vmatprep.subr.mxu0 0.0
    %963 = vmatpush1.msra.mxu0 %v110
    %964 = vmatprep.subr.mxu0 0.0
    %965 = vmatpush1.msra.mxu0 %v109
    %966 = vmatprep.subr.mxu0 0.0
    %967 = vmatpush2.msra.mxu0 0.0
    %968 = vmatprep.subr.mxu0 0.0
    %969 = vmatpush2.msra.mxu0 0.0
    %970 = vmatprep.subr.mxu0 0.0
    %971 = vmatpush2.msra.mxu0 0.0
    %972 = vmatprep.subr.mxu0 0.0
    %973 = vmatpush2.msra.mxu0 0.0
    %974 = vmatprep.subr.mxu0 0.0
    %975 = vmatpush2.msra.mxu0 0.0
    %976 = vmatprep.subr.mxu0 0.0
    %977 = vmatpush2.msra.mxu0 0.0
    %978 = vmatprep.subr.mxu0 0.0
    %979 = vmatpush2.msra.mxu0 0.0
    %980 = vmatprep.subr.mxu0 0.0
    %981 = vmatpush2.msra.mxu0 0.0
    %982 = vmatprep.subr.mxu0 0.0
    %983 = vmatpush2.msra.mxu0 0.0
    %984 = vmatprep.subr.mxu0 0.0
    %985 = vmatpush2.msra.mxu0 0.0
    %986 = vmatprep.subr.mxu0 0.0
    %987 = vmatpush2.msra.mxu0 0.0
    %988 = vmatprep.subr.mxu0 0.0
    %989 = vmatpush2.msra.mxu0 0.0
    %990 = vmatprep.subr.mxu0 0.0
    %991 = vmatpush2.msra.mxu0 0.0
    %992 = vmatprep.subr.mxu0 0.0
    %993 = vmatpush2.msra.mxu0 0.0
    %994 = vmatprep.subr.mxu0 0.0
    %995 = vmatpush2.msra.mxu0 0.0
    %996 = vmatprep.subr.mxu0 0.0
    %997 = vmatpush2.msra.mxu0 0.0
    %998 = vmatprep.mubr.f32.mxu0 0.0
    %999 = vmatmul.mubr.f32.gmra.mxu0 %v931
    %v1000 = vpop.f32.mrf.mxu0
    %v1001 = vadd.f32 0.0, %v1000
    %v1002 = vpop.f32.mrf.mxu0
    %1003 = vdwg.mxu0
    %v1004 = vsub.f32 %v158, %v1001
    %1005 = vmatprep.subr.mxu0 0.0
    %1006 = vmatpush1.msra.mxu0 %v140
    %1007 = vmatprep.subr.mxu0 0.0
    %1008 = vmatpush1.msra.mxu0 %v139
    %1009 = vmatprep.subr.mxu0 0.0
    %1010 = vmatpush1.msra.mxu0 %v138
    %1011 = vmatprep.subr.mxu0 0.0
    %1012 = vmatpush1.msra.mxu0 %v137
    %1013 = vmatprep.subr.mxu0 0.0
    %1014 = vmatpush1.msra.mxu0 %v136
    %1015 = vmatprep.subr.mxu0 0.0
    %1016 = vmatpush1.msra.mxu0 %v135
    %1017 = vmatprep.subr.mxu0 0.0
    %1018 = vmatpush1.msra.mxu0 %v134
    %1019 = vmatprep.subr.mxu0 0.0
    %1020 = vmatpush1.msra.mxu0 %v133
    %1021 = vmatprep.subr.mxu0 0.0
    %1022 = vmatpush1.msra.mxu0 %v132
    %1023 = vmatprep.subr.mxu0 0.0
    %1024 = vmatpush1.msra.mxu0 %v131
    %1025 = vmatprep.subr.mxu0 0.0
    %1026 = vmatpush1.msra.mxu0 %v130
    %1027 = vmatprep.subr.mxu0 0.0
    %1028 = vmatpush1.msra.mxu0 %v129
    %1029 = vmatprep.subr.mxu0 0.0
    %1030 = vmatpush1.msra.mxu0 %v128
    %1031 = vmatprep.subr.mxu0 0.0
    %1032 = vmatpush1.msra.mxu0 %v127
    %1033 = vmatprep.subr.mxu0 0.0
    %1034 = vmatpush1.msra.mxu0 %v126
    %1035 = vmatprep.subr.mxu0 0.0
    %1036 = vmatpush1.msra.mxu0 %v125
    %1037 = vmatprep.subr.mxu0 0.0
    %1038 = vmatpush2.msra.mxu0 0.0
    %1039 = vmatprep.subr.mxu0 0.0
    %1040 = vmatpush2.msra.mxu0 0.0
    %1041 = vmatprep.subr.mxu0 0.0
    %1042 = vmatpush2.msra.mxu0 0.0
    %1043 = vmatprep.subr.mxu0 0.0
    %1044 = vmatpush2.msra.mxu0 0.0
    %1045 = vmatprep.subr.mxu0 0.0
    %1046 = vmatpush2.msra.mxu0 0.0
    %1047 = vmatprep.subr.mxu0 0.0
    %1048 = vmatpush2.msra.mxu0 0.0
    %1049 = vmatprep.subr.mxu0 0.0
    %1050 = vmatpush2.msra.mxu0 0.0
    %1051 = vmatprep.subr.mxu0 0.0
    %1052 = vmatpush2.msra.mxu0 0.0
    %1053 = vmatprep.subr.mxu0 0.0
    %1054 = vmatpush2.msra.mxu0 0.0
    %1055 = vmatprep.subr.mxu0 0.0
    %1056 = vmatpush2.msra.mxu0 0.0
    %1057 = vmatprep.subr.mxu0 0.0
    %1058 = vmatpush2.msra.mxu0 0.0
    %1059 = vmatprep.subr.mxu0 0.0
    %1060 = vmatpush2.msra.mxu0 0.0
    %1061 = vmatprep.subr.mxu0 0.0
    %1062 = vmatpush2.msra.mxu0 0.0
    %1063 = vmatprep.subr.mxu0 0.0
    %1064 = vmatpush2.msra.mxu0 0.0
    %1065 = vmatprep.subr.mxu0 0.0
    %1066 = vmatpush2.msra.mxu0 0.0
    %1067 = vmatprep.subr.mxu0 0.0
    %1068 = vmatpush2.msra.mxu0 0.0
    %1069 = vmatprep.mubr.f32.mxu0 0.0
    %1070 = vmatmul.mubr.f32.gmra.mxu0 %v1004
    %v1071 = vpop.f32.mrf.mxu0
    %v1072 = vadd.f32 0.0, %v1071
    %v1073 = vpop.f32.mrf.mxu0
    %1074 = vdwg.mxu0
    %1075 = vmatprep.subr.mxu0 0.0
    %1076 = vmatpush1.msra.mxu0 %v156
    %1077 = vmatprep.subr.mxu0 0.0
    %1078 = vmatpush1.msra.mxu0 %v155
    %1079 = vmatprep.subr.mxu0 0.0
    %1080 = vmatpush1.msra.mxu0 %v154
    %1081 = vmatprep.subr.mxu0 0.0
    %1082 = vmatpush1.msra.mxu0 %v153
    %1083 = vmatprep.subr.mxu0 0.0
    %1084 = vmatpush1.msra.mxu0 %v152
    %1085 = vmatprep.subr.mxu0 0.0
    %1086 = vmatpush1.msra.mxu0 %v151
    %1087 = vmatprep.subr.mxu0 0.0
    %1088 = vmatpush1.msra.mxu0 %v150
    %1089 = vmatprep.subr.mxu0 0.0
    %1090 = vmatpush1.msra.mxu0 %v149
    %1091 = vmatprep.subr.mxu0 0.0
    %1092 = vmatpush1.msra.mxu0 %v148
    %1093 = vmatprep.subr.mxu0 0.0
    %1094 = vmatpush1.msra.mxu0 %v147
    %1095 = vmatprep.subr.mxu0 0.0
    %1096 = vmatpush1.msra.mxu0 %v146
    %1097 = vmatprep.subr.mxu0 0.0
    %1098 = vmatpush1.msra.mxu0 %v145
    %1099 = vmatprep.subr.mxu0 0.0
    %1100 = vmatpush1.msra.mxu0 %v144
    %1101 = vmatprep.subr.mxu0 0.0
    %1102 = vmatpush1.msra.mxu0 %v143
    %1103 = vmatprep.subr.mxu0 0.0
    %1104 = vmatpush1.msra.mxu0 %v142
    %1105 = vmatprep.subr.mxu0 0.0
    %1106 = vmatpush1.msra.mxu0 %v141
    %1107 = vmatprep.subr.mxu0 0.0
    %1108 = vmatpush2.msra.mxu0 0.0
    %1109 = vmatprep.subr.mxu0 0.0
    %1110 = vmatpush2.msra.mxu0 0.0
    %1111 = vmatprep.subr.mxu0 0.0
    %1112 = vmatpush2.msra.mxu0 0.0
    %1113 = vmatprep.subr.mxu0 0.0
    %1114 = vmatpush2.msra.mxu0 0.0
    %1115 = vmatprep.subr.mxu0 0.0
    %1116 = vmatpush2.msra.mxu0 0.0
    %1117 = vmatprep.subr.mxu0 0.0
    %1118 = vmatpush2.msra.mxu0 0.0
    %1119 = vmatprep.subr.mxu0 0.0
    %1120 = vmatpush2.msra.mxu0 0.0
    %1121 = vmatprep.subr.mxu0 0.0
    %1122 = vmatpush2.msra.mxu0 0.0
    %1123 = vmatprep.subr.mxu0 0.0
    %1124 = vmatpush2.msra.mxu0 0.0
    %1125 = vmatprep.subr.mxu0 0.0
    %1126 = vmatpush2.msra.mxu0 0.0
    %1127 = vmatprep.subr.mxu0 0.0
    %1128 = vmatpush2.msra.mxu0 0.0
    %1129 = vmatprep.subr.mxu0 0.0
    %1130 = vmatpush2.msra.mxu0 0.0
    %1131 = vmatprep.subr.mxu0 0.0
    %1132 = vmatpush2.msra.mxu0 0.0
    %1133 = vmatprep.subr.mxu0 0.0
    %1134 = vmatpush2.msra.mxu0 0.0
    %1135 = vmatprep.subr.mxu0 0.0
    %1136 = vmatpush2.msra.mxu0 0.0
    %1137 = vmatprep.subr.mxu0 0.0
    %1138 = vmatpush2.msra.mxu0 0.0
    %1139 = vmatprep.mubr.f32.mxu0 0.0
    %1140 = vmatmul.mubr.f32.gmra.mxu0 %v1072
    %v1141 = vpop.f32.mrf.mxu0
    %v1142 = vadd.f32 0.0, %v1141
    %v1143 = vpop.f32.mrf.mxu0
    %1144 = vdwg.mxu0
    %1145 = vmatprep.subr.mxu0 0.0
    %1146 = vmatpush1.msra.mxu0 %v108
    %1147 = vmatprep.subr.mxu0 0.0
    %1148 = vmatpush1.msra.mxu0 %v107
    %1149 = vmatprep.subr.mxu0 0.0
    %1150 = vmatpush1.msra.mxu0 %v106
    %1151 = vmatprep.subr.mxu0 0.0
    %1152 = vmatpush1.msra.mxu0 %v105
    %1153 = vmatprep.subr.mxu0 0.0
    %1154 = vmatpush1.msra.mxu0 %v104
    %1155 = vmatprep.subr.mxu0 0.0
    %1156 = vmatpush1.msra.mxu0 %v103
    %1157 = vmatprep.subr.mxu0 0.0
    %1158 = vmatpush1.msra.mxu0 %v102
    %1159 = vmatprep.subr.mxu0 0.0
    %1160 = vmatpush1.msra.mxu0 %v101
    %1161 = vmatprep.subr.mxu0 0.0
    %1162 = vmatpush1.msra.mxu0 %v100
    %1163 = vmatprep.subr.mxu0 0.0
    %1164 = vmatpush1.msra.mxu0 %v99
    %1165 = vmatprep.subr.mxu0 0.0
    %1166 = vmatpush1.msra.mxu0 %v98
    %1167 = vmatprep.subr.mxu0 0.0
    %1168 = vmatpush1.msra.mxu0 %v97
    %1169 = vmatprep.subr.mxu0 0.0
    %1170 = vmatpush1.msra.mxu0 %v96
    %1171 = vmatprep.subr.mxu0 0.0
    %1172 = vmatpush1.msra.mxu0 %v95
    %1173 = vmatprep.subr.mxu0 0.0
    %1174 = vmatpush1.msra.mxu0 %v94
    %1175 = vmatprep.subr.mxu0 0.0
    %1176 = vmatpush1.msra.mxu0 %v93
    %1177 = vmatprep.subr.mxu0 0.0
    %1178 = vmatpush2.msra.mxu0 0.0
    %1179 = vmatprep.subr.mxu0 0.0
    %1180 = vmatpush2.msra.mxu0 0.0
    %1181 = vmatprep.subr.mxu0 0.0
    %1182 = vmatpush2.msra.mxu0 0.0
    %1183 = vmatprep.subr.mxu0 0.0
    %1184 = vmatpush2.msra.mxu0 0.0
    %1185 = vmatprep.subr.mxu0 0.0
    %1186 = vmatpush2.msra.mxu0 0.0
    %1187 = vmatprep.subr.mxu0 0.0
    %1188 = vmatpush2.msra.mxu0 0.0
    %1189 = vmatprep.subr.mxu0 0.0
    %1190 = vmatpush2.msra.mxu0 0.0
    %1191 = vmatprep.subr.mxu0 0.0
    %1192 = vmatpush2.msra.mxu0 0.0
    %1193 = vmatprep.subr.mxu0 0.0
    %1194 = vmatpush2.msra.mxu0 0.0
    %1195 = vmatprep.subr.mxu0 0.0
    %1196 = vmatpush2.msra.mxu0 0.0
    %1197 = vmatprep.subr.mxu0 0.0
    %1198 = vmatpush2.msra.mxu0 0.0
    %1199 = vmatprep.subr.mxu0 0.0
    %1200 = vmatpush2.msra.mxu0 0.0
    %1201 = vmatprep.subr.mxu0 0.0
    %1202 = vmatpush2.msra.mxu0 0.0
    %1203 = vmatprep.subr.mxu0 0.0
    %1204 = vmatpush2.msra.mxu0 0.0
    %1205 = vmatprep.subr.mxu0 0.0
    %1206 = vmatpush2.msra.mxu0 0.0
    %1207 = vmatprep.subr.mxu0 0.0
    %1208 = vmatpush2.msra.mxu0 0.0
    %1209 = vmatprep.mubr.f32.mxu0 0.0
    %1210 = vmatmul.mubr.f32.gmra.mxu0 %v931
    %v1211 = vpop.f32.mrf.mxu0
    %v1212 = vadd.f32 %v1142, %v1211
    %v1213 = vpop.f32.mrf.mxu0
    %1214 = vdwg.mxu0
    %v1215 = vadd.f32 %v1212, %v157
    %1216 = vst [vmem:[#allocation11] sm:$0x1] %v1215
    // Predicated region
    $region50: #{tpu_custom_call.1} parent=1 // pred_check
      _
    $region51: #{tpu_custom_call.1} parent=1 // pred_check_branch
      %1218 = sbr.rel (0) target = $region53
    $region52: #{tpu_custom_call.1} parent=1 // pred_region
      %s1220 = ssub.s32 16, 16
      %1221 = vsyncadd [#allocation4], %s1220
      %s1223 = sshll.u32 [#allocation11], 4
      %s1224 = int_to_ptr.vmem [resolvable:$true] %s1223
      %1226 = dma.vmem_to_hbm [thread:$0]  %s1224, 16, %s7, [#allocation4]
    $region53: #{tpu_custom_call.1} parent=1 // pred_fallthru
      _
    // Predicated region
    $region54: #{tpu_custom_call.1} parent=1 // pred_check
      _
    $region55: #{tpu_custom_call.1} parent=1 // pred_check_branch
      %1228 = sbr.rel (0) target = $region57
    $region56: #{tpu_custom_call.1} parent=1 // pred_region
      %1229 = dma.done [#allocation4], 16
    $region57: #{tpu_custom_call.1} parent=1 // pred_fallthru
      _
    %1230 = vsyncpa [#allocation3], 1
    %1231 = vsyncpa [#allocation6], 1
    %1232 = vsyncpa [#allocation9], 1
    %1233 = vsyncpa [#allocation4], 1

</llo_original>
